<compile_context>
chip_gen: v6e
topology: v6e:2x2x1
jax: 0.10.0
libtpu: 0.0.40
codegen_flags: <defaults>
</compile_context>

<pallas_src>
import functools

import jax
import jax.numpy as jnp
from jax.experimental import pallas as pl
from jax.experimental.pallas import tpu as pltpu


_NEG_LARGE = -1e30  # finite "-inf" for masked rows (avoids inf-inf NaNs)


def _round_up(x, m):
    return (x + m - 1) // m * m


def _cdiv(a, b):
    return (a + b - 1) // b


def _focal_weight(one_minus_p, gamma):
    """(1 - p_t) ** gamma. Small integer gamma -> VPU multiplies, no EUP pow."""
    g = float(gamma)
    if g == 0.0:
        return jnp.ones_like(one_minus_p)
    if g.is_integer() and 1.0 <= g <= 8.0:
        w = one_minus_p
        for _ in range(int(g) - 1):
            w = w * one_minus_p
        return w
    # Non-integer gamma: pow (exp/log on EUP); clamp base (p_t can exceed 1 by ulps).
    return jnp.power(jnp.maximum(one_minus_p, 0.0), g)


def _focal_loss_kernel(logits_ref, tgt_ref, out_ref, *, gamma, n_valid, row_tile):
    i = pl.program_id(0)

    x = logits_ref[...].astype(jnp.float32)                      # (TN, C), true C

    # Only the clamped last block contains undefined rows; statically skip the mask
    # when the row count divides evenly.
    has_partial_tile = (n_valid % row_tile) != 0
    if has_partial_tile:
        row_ids = i * row_tile + jax.lax.broadcasted_iota(
            jnp.int32, (row_tile, 1), 0)                         # (TN, 1)
        row_valid = row_ids < n_valid
        # Mask BEFORE max / exp so garbage (possibly NaN/Inf) rows can't poison them.
        x = jnp.where(row_valid, x, _NEG_LARGE)

    # Numerically stable softmax statistics over classes.
    m = jnp.max(x, axis=1, keepdims=True)                        # (TN, 1)
    shifted = x - m                                              # (TN, C)
    sumexp = jnp.sum(jnp.exp(shifted), axis=1, keepdims=True)    # (TN, 1)

    # Gather the target-class shifted logit (masked select, no one-hot multiply).
    cls_ids = jax.lax.broadcasted_iota(jnp.int32, x.shape, 1)
    shifted_t = jnp.sum(jnp.where(cls_ids == tgt_ref[...], shifted, 0.0),
                        axis=1, keepdims=True)                   # (TN, 1)

    # Per-sample focal loss computed on (TN, 1) only — no full-tile pow.
    logp_t = shifted_t - jnp.log(sumexp)                         # (TN, 1), <= 0
    p_t = jnp.exp(logp_t)                                        # (TN, 1)
    focal = _focal_weight(1.0 - p_t, gamma)                      # (TN, 1)
    per_sample = -focal * logp_t                                 # (TN, 1)

    if has_partial_tile:
        per_sample = jnp.where(row_valid, per_sample, 0.0)

    # Lane-dense (8, 128) output block: tile partial sum lives at [0, 0].
    tile_sum = jnp.sum(per_sample)
    sub = jax.lax.broadcasted_iota(jnp.int32, out_ref.shape, 0)
    lane = jax.lax.broadcasted_iota(jnp.int32, out_ref.shape, 1)
    out_ref[...] = jnp.where((sub == 0) & (lane == 0), tile_sum, 0.0)


def focal_loss_multiclass(logits, targets, *, gamma=2.0, alpha=None,
                          reduction="mean"):
    """Pallas implementation of FocalLossMulticlass.forward (alpha=None path).

    Accepts f32 or bf16 logits (bf16 halves HBM read traffic; math is f32 in-kernel).
    """
    assert alpha is None                     # TODO(synk): per-class alpha weighting
    assert reduction in ("mean", "sum")      # TODO(synk): reduction='none'

    n, c = logits.shape
    itemsize = jnp.dtype(logits.dtype).itemsize

    # Generation-aware VMEM budget: 64 MiB scoped limit on v5e/v6e (128 MiB physical),
    # 32 MiB on v7x (64 MiB per TC).  Conservative fallback if the query is unavailable.
    try:
        vmem_cap = int(pltpu.get_tpu_info().vmem_capacity_bytes)
    except Exception:
        vmem_cap = 64 * 1024 * 1024
    vmem_limit = min(vmem_cap // 2, 64 * 1024 * 1024)
    budget = max(8 * 1024 * 1024, vmem_limit - 4 * 1024 * 1024)   # headroom for output

    # VMEM footprint per row per pipeline buffer: lane-padded logits + lane-padded targets.
    c_vmem = _round_up(c, 128)
    bytes_per_row = c_vmem * itemsize + 128 * 4

    # Biggest double-buffered row tile that fits the budget (multi-MiB DMAs).
    max_rows = max(8, (budget // (2 * bytes_per_row)) // 8 * 8)
    rt = min(max_rows, _round_up(n, 8))
    if n > 8:
        # Keep >= 2 grid tiles so the "parallel" axis can use both v7x TensorCores.
        rt = min(rt, _round_up(_cdiv(n, 2), 8))
    rt = max(8, (rt // 8) * 8)
    num_tiles = _cdiv(n, rt)

    targets2d = targets.astype(jnp.int32).reshape(n, 1)

    kernel = functools.partial(_focal_loss_kernel, gamma=gamma, n_valid=n,
                               row_tile=rt)

    partials = pl.pallas_call(
        kernel,
        out_shape=jax.ShapeDtypeStruct((num_tiles * 8, 128), jnp.float32),
        grid_spec=pl.GridSpec(
            grid=(num_tiles,),
            in_specs=[
                # Last dim == full class extent -> legal even when c % 128 != 0,
                # and no padded copy of logits is ever materialized in HBM.
                pl.BlockSpec((rt, c), lambda i: (i, 0)),
                pl.BlockSpec((rt, 1), lambda i: (i, 0)),
            ],
            out_specs=pl.BlockSpec((8, 128), lambda i: (i, 0)),
        ),
        compiler_params=pltpu.CompilerParams(
            dimension_semantics=("parallel",),        # independent tiles -> megacore
            vmem_limit_bytes=int(vmem_limit)),
    )(logits, targets2d)

    total = jnp.sum(partials)                         # tree-style finish in XLA
    if reduction == "mean":
        total = total / jnp.float32(n)
    return total


def _reference(logits, targets, gamma=2.0, reduction="mean"):
    log_probs = jax.nn.log_softmax(logits.astype(jnp.float32), axis=1)
    probs = jnp.exp(log_probs)
    one_hot = jax.nn.one_hot(targets, logits.shape[1], dtype=jnp.float32)
    focal = (1.0 - probs) ** gamma
    loss = jnp.sum(-one_hot * focal * log_probs, axis=1)
    if reduction == "mean":
        return jnp.mean(loss)
    return jnp.sum(loss)


if __name__ == "__main__":
    key = jax.random.PRNGKey(0)
    k1, k2, k3, k4 = jax.random.split(key, 4)

    # Primary small case matching the torch module's expected use.
    N, C = 16, 10
    logits = jax.random.normal(k1, (N, C), dtype=jnp.float32)
    targets = jax.random.randint(k2, (N,), 0, C, dtype=jnp.int32)

    loss = jax.block_until_ready(
        focal_loss_multiclass(logits, targets, gamma=2.0, reduction="mean"))
    ref = _reference(logits, targets, gamma=2.0, reduction="mean")
    assert jnp.allclose(loss, ref, rtol=1e-5, atol=1e-4), (loss, ref)

    # Odd batch / class counts exercise the clamped partial row tile and the
    # non-128-multiple class extent (no padding anywhere).
    N2, C2 = 13, 37
    logits2 = jax.random.normal(k3, (N2, C2), dtype=jnp.float32)
    targets2 = jax.random.randint(k4, (N2,), 0, C2, dtype=jnp.int32)
    loss2 = jax.block_until_ready(
        focal_loss_multiclass(logits2, targets2, gamma=2.0, reduction="sum"))
    ref2 = _reference(logits2, targets2, gamma=2.0, reduction="sum")
    assert jnp.allclose(loss2, ref2, rtol=1e-5, atol=1e-4), (loss2, ref2)

    # bf16 input path (halves HBM read traffic; in-kernel math stays f32).
    logits3 = logits2.astype(jnp.bfloat16)
    loss3 = jax.block_until_ready(
        focal_loss_multiclass(logits3, targets2, gamma=2.0, reduction="mean"))
    ref3 = _reference(logits3.astype(jnp.float32), targets2, gamma=2.0,
                      reduction="mean")
    assert jnp.allclose(loss3, ref3, rtol=2e-2, atol=2e-2), (loss3, ref3)

    print("KERNEL_OK")
</pallas_src>

<mosaic_0001>
module attributes {stable_mosaic.version = 11 : i64} {
  func.func @_focal_loss_kernel(%arg0: i32, %arg1: memref<8x10xf32, #tpu.memory_space<vmem>>, %arg2: memref<8x1xi32, #tpu.memory_space<vmem>>, %arg3: memref<8x128xf32, #tpu.memory_space<vmem>>) attributes {dimension_semantics = [#tpu.dimension_semantics<parallel>], iteration_bounds = array<i64: 2>, scalar_prefetch = 0 : i64, scratch_operands = 0 : i64, tpu.core_type = #tpu.core_type<tc>, window_params = [{transform_indices = @transform_0, window_bounds = array<i64: 8, 10>}, {transform_indices = @transform_1, window_bounds = array<i64: 8, 1>}, {transform_indices = @transform_2, window_bounds = array<i64: 8, 128>}]} {
    %c0 = arith.constant 0 : index
    %c0_0 = arith.constant 0 : index
    %0 = vector.load %arg1[%c0, %c0_0] : memref<8x10xf32, #tpu.memory_space<vmem>>, vector<8x10xf32>
    %cst = arith.constant dense<0xFF800000> : vector<8xf32>
    %1 = vector.multi_reduction <maximumf>, %0, %cst [1] : vector<8x10xf32> to vector<8xf32>
    %2 = vector.shape_cast %1 : vector<8xf32> to vector<8x1xf32>
    %3 = vector.broadcast %2 : vector<8x1xf32> to vector<8x10xf32>
    %4 = arith.subf %0, %3 : vector<8x10xf32>
    %5 = math.exp %4 : vector<8x10xf32>
    %cst_1 = arith.constant dense<0.000000e+00> : vector<8xf32>
    %6 = vector.multi_reduction <add>, %5, %cst_1 [1] : vector<8x10xf32> to vector<8xf32>
    %7 = vector.shape_cast %6 : vector<8xf32> to vector<8x1xf32>
    %8 = tpu.iota {dimensions = array<i32: 1>} : vector<8x10xi32>
    %c0_2 = arith.constant 0 : index
    %c0_3 = arith.constant 0 : index
    %9 = vector.load %arg2[%c0_2, %c0_3] : memref<8x1xi32, #tpu.memory_space<vmem>>, vector<8x1xi32>
    %10 = vector.broadcast %9 : vector<8x1xi32> to vector<8x10xi32>
    %11 = arith.cmpi eq, %8, %10 : vector<8x10xi32>
    %cst_4 = arith.constant 0.000000e+00 : f32
    %12 = vector.broadcast %cst_4 : f32 to vector<8x10xf32>
    %13 = arith.select %11, %4, %12 : vector<8x10xi1>, vector<8x10xf32>
    %cst_5 = arith.constant dense<0.000000e+00> : vector<8xf32>
    %14 = vector.multi_reduction <add>, %13, %cst_5 [1] : vector<8x10xf32> to vector<8xf32>
    %15 = vector.shape_cast %14 : vector<8xf32> to vector<8x1xf32>
    %16 = math.log %7 : vector<8x1xf32>
    %17 = arith.subf %15, %16 : vector<8x1xf32>
    %18 = math.exp %17 : vector<8x1xf32>
    %cst_6 = arith.constant 1.000000e+00 : f32
    %19 = vector.broadcast %cst_6 : f32 to vector<8x1xf32>
    %20 = arith.subf %19, %18 : vector<8x1xf32>
    %21 = arith.mulf %20, %20 : vector<8x1xf32>
    %cst_7 = arith.constant 0.000000e+00 : f32
    %22 = vector.broadcast %cst_7 : f32 to vector<8x1xf32>
    %23 = arith.subf %22, %21 : vector<8x1xf32>
    %24 = arith.mulf %23, %17 : vector<8x1xf32>
    %25 = vector.shape_cast %24 : vector<8x1xf32> to vector<1x8x1xf32>
    %cst_8 = arith.constant dense<0.000000e+00> : vector<1xf32>
    %26 = vector.multi_reduction <add>, %25, %cst_8 [1, 2] : vector<1x8x1xf32> to vector<1xf32>
    %27 = vector.shape_cast %26 : vector<1xf32> to vector<1x1x1xf32>
    %28 = vector.extract %27[0, 0, 0] : f32 from vector<1x1x1xf32>
    %29 = tpu.iota {dimensions = array<i32: 0>} : vector<8x128xi32>
    %30 = tpu.iota {dimensions = array<i32: 1>} : vector<8x128xi32>
    %c0_i32 = arith.constant 0 : i32
    %31 = vector.broadcast %c0_i32 : i32 to vector<8x128xi32>
    %32 = arith.cmpi eq, %29, %31 : vector<8x128xi32>
    %c0_i32_9 = arith.constant 0 : i32
    %33 = vector.broadcast %c0_i32_9 : i32 to vector<8x128xi32>
    %34 = arith.cmpi eq, %30, %33 : vector<8x128xi32>
    %35 = arith.andi %32, %34 : vector<8x128xi1>
    %cst_10 = arith.constant 0.000000e+00 : f32
    %36 = vector.broadcast %28 : f32 to vector<8x128xf32>
    %37 = vector.broadcast %cst_10 : f32 to vector<8x128xf32>
    %38 = arith.select %35, %36, %37 : vector<8x128xi1>, vector<8x128xf32>
    %c0_11 = arith.constant 0 : index
    %c0_12 = arith.constant 0 : index
    %39 = vector.load %arg3[%c0_11, %c0_12] : memref<8x128xf32, #tpu.memory_space<vmem>>, vector<8x128xf32>
    tpu.vector_store %arg3[%c0_11, %c0_12], %38 {strides = array<i32>} : memref<8x128xf32, #tpu.memory_space<vmem>>, vector<8x128xf32>,
    return
  }
  func.func @transform_0(%arg0: i32) -> (i32, i32) {
    %c0_i32 = arith.constant 0 : i32
    %c0_i32_0 = arith.constant 0 : i32
    return %arg0, %c0_i32 : i32, i32
  }
  func.func @transform_1(%arg0: i32) -> (i32, i32) {
    %c0_i32 = arith.constant 0 : i32
    %c0_i32_0 = arith.constant 0 : i32
    return %arg0, %c0_i32 : i32, i32
  }
  func.func @transform_2(%arg0: i32) -> (i32, i32) {
    %c0_i32 = arith.constant 0 : i32
    %c0_i32_0 = arith.constant 0 : i32
    return %arg0, %c0_i32 : i32, i32
  }
}

</mosaic_0001>

<llo_original>
// kernel: tpu_custom_call.1
$region0: #{tpu_custom_call.1}
  #allocation0 [shape = 'u32[]', space=smem, size = 0x4, offset = 0x4, fixed_abs, tag = 'smem constant byte address 0x4 - core index']
  #allocation1 [shape = 'u32[144,128]{1,0:T(1,128)}', space=vmem, size = 0x12000, scoped, tag = 'internal scratch']
  %s0 = inlined_call_operand.vmem [shape: f32[16,10], index: 0, kind: input, shape index: {}]
  %s1 = inlined_call_operand.vmem [shape: s32[16,1], index: 1, kind: input, shape index: {}]
  %s2 = inlined_call_operand.hbm [shape: f32[16,128], index: 2, kind: output, shape index: {}]
  %s3 = sld [smem:[#allocation0]]
  $region41: #{tpu_custom_call.1} parent=0
    _
  %s5 = ssub.s32 1, %s3
  %s6 = scalar_select 0, %s5, %s3
  $region1: #{tpu_custom_call.1} parent=0
    #allocation2 [shape = 'u8[8192]{0}', space=vmem, size = 0x2000, scoped, tag = 'output window, operand 0']
    #allocation3 [shape = 's32[2]{0}', space=sflag, size = 0x8, scoped, tag = 'scoped memory for tpu_custom_call.1']
    %7 = vsyncpa [#allocation3], 0
    %s8 = scalar_lea.sflag [#allocation3], 1
    %9 = vsyncpa %s8, 0
    loop: start=0, step=1, limit=4
    $region2: #{tpu_custom_call.1} parent=1 // loop_pre_header
      _
    $region3: #{tpu_custom_call.1} parent=1 // loop_header
      %s11 = sphi 0, %s15
      %p12 = scmp.ge.s32.totalorder %s11, 4
      %s21 = sphi 0, %s23
      %s24 = sphi 0, %s21
      %s25 = sphi 0, %s24
      %s41 = sphi 0, %s25
      %s47 = sphi 0, %s49
      %s50 = sphi 0, %s47
      %s51 = sphi 0, %s50
      %s67 = sphi 0, %s51
      %s73 = sphi 0, %s75
      %s76 = sphi 0, %s73
      %s77 = sphi 0, %s76
      %s93 = sphi 0, %s77
    $region4: #{tpu_custom_call.1} parent=1 // loop_header_branch
      %14 = sbr.rel (%p12) target = $region8
    $region5: #{tpu_custom_call.1} parent=1 // loop_body
      %s16 = ssub.s32 %s11, 1
      %s17 = ssub.s32 %s11, 2
      %s18 = sadd.s32 %s11, 1
      %s19 = ssub.s32 %s11, %s18
      %p20 = scmp.eq.s32.totalorder %s19, 0
      %s22 = sadd.s32 %s21, 1
      %s23 = scalar_select %p20, %s21, %s22
      %p26 = pneg %p20
      %p27 = scmp.eq.s32.totalorder %s11, 1
      %p28 = por %p26, %p27
      %p29 = scmp.ne.s32.totalorder %s21, %s24
      %p30 = scmp.eq.s32.totalorder %s11, 0
      %p31 = por %p29, %p30
      %p32 = scmp.ne.s32.totalorder %s21, %s24
      %p33 = scmp.eq.s32.totalorder %s16, 1
      %p34 = por %p32, %p33
      %p35 = scmp.ne.s32.totalorder %s24, %s25
      %p36 = scmp.eq.s32.totalorder %s16, 0
      %p37 = por %p35, %p36
      %p38 = scmp.ne.s32.totalorder %s24, %s25
      %p39 = scmp.eq.s32.totalorder %s17, 1
      %p40 = por %p38, %p39
      %p42 = scmp.ne.s32.totalorder %s25, %s41
      %p43 = scmp.eq.s32.totalorder %s17, 0
      %p44 = por %p42, %p43
      %s45 = ssub.s32 %s11, %s18
      %p46 = scmp.eq.s32.totalorder %s45, 0
      %s48 = sadd.s32 %s47, 1
      %s49 = scalar_select %p46, %s47, %s48
      %p52 = pneg %p46
      %p53 = scmp.eq.s32.totalorder %s11, 1
      %p54 = por %p52, %p53
      %p55 = scmp.ne.s32.totalorder %s47, %s50
      %p56 = scmp.eq.s32.totalorder %s11, 0
      %p57 = por %p55, %p56
      %p58 = scmp.ne.s32.totalorder %s47, %s50
      %p59 = scmp.eq.s32.totalorder %s16, 1
      %p60 = por %p58, %p59
      %p61 = scmp.ne.s32.totalorder %s50, %s51
      %p62 = scmp.eq.s32.totalorder %s16, 0
      %p63 = por %p61, %p62
      %p64 = scmp.ne.s32.totalorder %s50, %s51
      %p65 = scmp.eq.s32.totalorder %s17, 1
      %p66 = por %p64, %p65
      %p68 = scmp.ne.s32.totalorder %s51, %s67
      %p69 = scmp.eq.s32.totalorder %s17, 0
      %p70 = por %p68, %p69
      %s71 = ssub.s32 %s11, %s18
      %p72 = scmp.eq.s32.totalorder %s71, 0
      %s74 = sadd.s32 %s73, 1
      %s75 = scalar_select %p72, %s73, %s74
      %p78 = pneg %p72
      %p79 = scmp.eq.s32.totalorder %s11, 1
      %p80 = por %p78, %p79
      %p81 = scmp.ne.s32.totalorder %s73, %s76
      %p82 = scmp.eq.s32.totalorder %s11, 0
      %p83 = por %p81, %p82
      %p84 = scmp.ne.s32.totalorder %s73, %s76
      %p85 = scmp.eq.s32.totalorder %s16, 1
      %p86 = por %p84, %p85
      %p87 = scmp.ne.s32.totalorder %s76, %s77
      %p88 = scmp.eq.s32.totalorder %s16, 0
      %p89 = por %p87, %p88
      %p90 = scmp.ne.s32.totalorder %s76, %s77
      %p91 = scmp.eq.s32.totalorder %s17, 1
      %p92 = por %p90, %p91
      %p94 = scmp.ne.s32.totalorder %s77, %s93
      %p95 = scmp.eq.s32.totalorder %s17, 0
      %p96 = por %p94, %p95
      %p97 = scmp.le.s32.totalorder 1, %s11
      %p98 = scmp.lt.s32.totalorder %s11, 3
      %p99 = pnand %p97, %p98
      %p100 = pneg %p99
      // Predicated region
      $region9: #{tpu_custom_call.1} parent=5 // pred_check
        _
      $region10: #{tpu_custom_call.1} parent=5 // pred_check_branch
        %102 = sbr.rel (%p99) target = $region12
      $region11: #{tpu_custom_call.1} parent=5 // pred_region
        %s103 = ssub.s32 %s11, 1
      $region12: #{tpu_custom_call.1} parent=5 // pred_fallthru
        _
      %p104 = scmp.lt.s32.totalorder %s11, 2
      // Predicated region
      $region13: #{tpu_custom_call.1} parent=5 // pred_check
        %p105 = pneg %p104
      $region14: #{tpu_custom_call.1} parent=5 // pred_check_branch
        %107 = sbr.rel (%p105) target = $region16
      $region15: #{tpu_custom_call.1} parent=5 // pred_region
        // Predicated region
        $region17: #{tpu_custom_call.1} parent=15 // pred_check
          %p108 = pneg %p31
        $region18: #{tpu_custom_call.1} parent=15 // pred_check_branch
          %110 = sbr.rel (%p108) target = $region20
        $region19: #{tpu_custom_call.1} parent=15 // pred_region
          %p111 = scmp.lt.s32.totalorder %s11, 1
          %s112 = scalar_select %p111, %s11, 1
          %s113 = smul.addr %s112, 8
          %s114 = scalar_lea.vmem %s0, %s113
        $region20: #{tpu_custom_call.1} parent=15 // pred_fallthru
          _
        // Predicated region
        $region21: #{tpu_custom_call.1} parent=15 // pred_check
          %p115 = pneg %p57
        $region22: #{tpu_custom_call.1} parent=15 // pred_check_branch
          %117 = sbr.rel (%p115) target = $region24
        $region23: #{tpu_custom_call.1} parent=15 // pred_region
          %p118 = scmp.lt.s32.totalorder %s11, 1
          %s119 = scalar_select %p118, %s11, 1
          %s120 = smul.addr %s119, 8
          %s121 = scalar_lea.vmem %s1, %s120
        $region24: #{tpu_custom_call.1} parent=15 // pred_fallthru
          _
      $region16: #{tpu_custom_call.1} parent=5 // pred_fallthru
        _
      %p122 = scmp.le.s32.totalorder 1, %s11
      %p123 = scmp.lt.s32.totalorder %s11, 3
      %p124 = pnand %p122, %p123
      %p125 = pneg %p124
      // Predicated region
      $region25: #{tpu_custom_call.1} parent=5 // pred_check
        _
      $region26: #{tpu_custom_call.1} parent=5 // pred_check_branch
        %127 = sbr.rel (%p124) target = $region28
      $region27: #{tpu_custom_call.1} parent=5 // pred_region
        %s128 = ssub.s32 %s11, 1
        %p129 = scmp.lt.s32.totalorder %s16, 1
        %s130 = scalar_select %p129, %s16, 1
        %s131 = smul.addr %s130, 8
        %s132 = scalar_lea.vmem %s0, %s131
        %p133 = pneg %p37
        %p134 = pneg %p34
        %p135 = scmp.lt.s32.totalorder %s16, 1
        %s136 = scalar_select %p135, %s16, 1
        %s137 = smul.addr %s136, 8
        %s138 = scalar_lea.vmem %s1, %s137
        %p139 = pneg %p63
        %p140 = pneg %p60
        %p141 = pneg %p89
        %p142 = pneg %p86
        %s143 = sand.u32 %s76, 1
        %s144 = scalar_lea.sflag [#allocation3], %s143
        %s145 = sand.u32 %s76, 1
        %s146 = smul.addr %s145, 8
        %s147 = scalar_lea.vmem [#allocation2], %s146
        %p148 = scmp.lt.s32.totalorder %s16, 1
        %s149 = scalar_select %p148, %s16, 1
        %s150 = smul.addr %s149, 8
        %s151 = scalar_lea.vmem %s0, %s150
        %p152 = scmp.lt.s32.totalorder %s16, 1
        %s153 = scalar_select %p152, %s16, 1
        %s154 = smul.addr %s153, 8
        %s155 = scalar_lea.vmem %s1, %s154
        %v156 = vld [vmem:[%s151] sm:$0xff]
        %vm157 = vcmask 80896
        %v158 = vsel %vm157, %v156, -inf
        %159 = vmax.xlane.f32.xlu0 %v158
        %v160 = vpop.xlane.xlu0 %159
        %v161 = vsub.f32 %v156, %v160
        %v162 = vmul.f32 %v161, 1.442695
        %v163 = vpow.pop %v162
        %v164 = vsel %vm157, %v163, 0.0
        %165 = vadd.xlane.f32.xlu0 %v164
        %v166 = vpop.xlane.xlu0 %165
        %v167 = vlaneseq
        %v168 = vand.u32 %v167, 127
        %v169 = vld [vmem:[%s155] sm:$0xff]
        %170 = vset.pattern.permute.xlu0 0
        %171 = vperm.xlu0 %170, %v169
        %v172 = vpop.permute.xlu0 %171
        %vm173 = vcmp.eq.s32.totalorder %v168, %v172
        %v174 = vsel %vm173, %v161, 0.0
        %v175 = vsel %vm157, %v174, 0.0
        %176 = vadd.xlane.f32.xlu0 %v175
        %v177 = vpop.xlane.xlu0 %176
        %v178 = vlog2.pop %v166
        %v179 = vmul.f32 %v178, 0.6931472
        %v180 = vsub.f32 %v177, %v179
        %v181 = vmul.f32 %v180, 1.442695
        %v182 = vpow.pop %v181
        %v183 = vsub.f32 1.0, %v182
        %v184 = vmul.f32 %v183, %v183
        %v185 = vsub.f32 0.0, %v184
        %v186 = vmul.f32 %v185, %v180
        %vm187 = vcmask 7168
        %v188 = vsel %vm187, %v186, 0.0
        %189 = vadd.xlane.f32.xlu0 %v188
        %v190 = vpop.xlane.xlu0 %189
        %v191 = vrot.slane %v190, 4
        %v192 = vadd.f32 %v190, %v191
        %v193 = vrot.slane %v192, 2
        %v194 = vadd.f32 %v192, %v193
        %v195 = vrot.slane %v194, 1
        %v196 = vadd.f32 %v194, %v195
        %s197 = vtos %v196
        %v198 = vlaneseq
        %v199 = vshrl.u32 %v198, 7
        %vm200 = vcmp.eq.s32.totalorder %v199, 0
        %vm201 = vcmp.eq.s32.totalorder %v168, 0
        %vm202 = vmand %vm200, %vm201
        %v203 = vstv %s197
        %v204 = vsel %vm202, %v203, 0.0
        %205 = vst [vmem:[%s147] sm:$0xff] %v204
        %s206 = sand.u32 %s76, 1
        %s207 = scalar_lea.sflag [#allocation3], %s206
        %s208 = sand.u32 %s76, 1
        %s209 = smul.addr %s208, 8
        %s210 = scalar_lea.vmem [#allocation2], %s209
        // Predicated region
        $region29: #{tpu_custom_call.1} parent=27 // pred_check
          %p211 = pneg %p86
        $region30: #{tpu_custom_call.1} parent=27 // pred_check_branch
          %213 = sbr.rel (%p211) target = $region32
        $region31: #{tpu_custom_call.1} parent=27 // pred_region
          %s215 = ssub.s32 128, 128
          %216 = vsyncadd %s207, %s215
          %s217 = smul.addr %s16, 128
          %s218 = scalar_lea.hbm %s2, %s217
          %s220 = sshll.u32 %s210, 4
          %s221 = int_to_ptr.vmem [resolvable:$true] %s220
          %223 = dma.vmem_to_hbm [thread:$0]  %s221, 128, %s218, %s207
        $region32: #{tpu_custom_call.1} parent=27 // pred_fallthru
          _
      $region28: #{tpu_custom_call.1} parent=5 // pred_fallthru
        _
      %p224 = scmp.le.s32.totalorder 2, %s11
      // Predicated region
      $region33: #{tpu_custom_call.1} parent=5 // pred_check
        %p225 = pneg %p224
      $region34: #{tpu_custom_call.1} parent=5 // pred_check_branch
        %227 = sbr.rel (%p225) target = $region36
      $region35: #{tpu_custom_call.1} parent=5 // pred_region
        %s228 = ssub.s32 %s11, 2
        // Predicated region
        $region37: #{tpu_custom_call.1} parent=35 // pred_check
          %p229 = pneg %p92
        $region38: #{tpu_custom_call.1} parent=35 // pred_check_branch
          %231 = sbr.rel (%p229) target = $region40
        $region39: #{tpu_custom_call.1} parent=35 // pred_region
          %s232 = sand.u32 %s77, 1
          %s233 = scalar_lea.sflag [#allocation3], %s232
          %s234 = sand.u32 %s77, 1
          %s235 = smul.addr %s234, 8
          %s236 = scalar_lea.vmem [#allocation2], %s235
          %237 = dma.done %s233, 128
        $region40: #{tpu_custom_call.1} parent=35 // pred_fallthru
          _
      $region36: #{tpu_custom_call.1} parent=5 // pred_fallthru
        _
    $region6: #{tpu_custom_call.1} parent=1 // loop_footer
      %s15 = sadd.s32 1, %s11
    $region7: #{tpu_custom_call.1} parent=1 // loop_footer_branch
      %10 = sbr.rel target = $region3
    $region8: #{tpu_custom_call.1} parent=1 // loop_exit
      _
    %238 = vsyncpa [#allocation3], 1
    %s239 = scalar_lea.sflag [#allocation3], 1
    %240 = vsyncpa %s239, 1

</llo_original>
